<compile_context>
chip_gen: v7x
topology: tpu7x:2x2x1
jax: 0.10.0
libtpu: 0.0.40
codegen_flags: <defaults>
</compile_context>

<pallas_src>
import functools

import jax
import jax.numpy as jnp
from jax.experimental import pallas as pl
from jax.experimental.pallas import tpu as pltpu


# ---------------------------------------------------------------------------
# Pallas kernel: one M-tile of   out = act(cols @ W + b)
#   x_ref : (tm, 9*Cin_p)  bf16   im2col rows for tm output pixels
#   w_ref : (9*Cin_p, Cout) bf16  resident (constant index_map)
#   b_ref : (1, Cout)       f32   resident
#   o_ref : (tm, Cout)      bf16 (f32 for the final tanh layer)
# ---------------------------------------------------------------------------
def _gemm_bias_act_kernel(x_ref, w_ref, b_ref, o_ref, *, act_tanh):
    acc = jnp.dot(x_ref[...], w_ref[...], preferred_element_type=jnp.float32)
    acc = acc + b_ref[...]                                   # f32 epilogue
    if act_tanh:
        acc = jnp.tanh(acc)                                  # EUP
    else:
        acc = jnp.where(acc >= 0.0, acc, 0.2 * acc)          # leaky_relu(0.2), VPU
    o_ref[...] = acc.astype(o_ref.dtype)


def _m_tile(m):
    # Whole GEMM as a single resident tile when small (the common case here);
    # otherwise 512-row tiles (<= ~1.2 MB per buffer even at K = 9*128).
    if m <= 512:
        return -(-m // 16) * 16
    return 512


def conv2d_block(x, w, b, act_tanh=False, out_dtype=jnp.bfloat16):
    """Conv2DBlock: 3x3 'same' conv + bias + tanh / leaky_relu(0.2) via Pallas GEMM."""
    n, h, width, cin = x.shape
    assert w.shape[0] == 9 and w.shape[1] == cin
    cout = w.shape[2]

    # Pad channels to a multiple of 8 (layer_0: 4 -> 8); zero taps contribute 0.
    cin_p = max(8, -(-cin // 8) * 8)
    if cin_p != cin:
        x = jnp.pad(x, ((0, 0), (0, 0), (0, 0), (0, cin_p - cin)))
        w = jnp.pad(w, ((0, 0), (0, cin_p - cin), (0, 0)))

    x = x.astype(jnp.bfloat16)
    wf = w.astype(jnp.bfloat16).reshape(9 * cin_p, cout)     # tap-major, chan-minor
    bf = b.astype(jnp.float32).reshape(1, cout)

    # im2col (layout plumbing only): spatial "same" pad, then stack the 9 taps
    # along channels.  Tap order (dh*3 + dw) matches the weight reshape above.
    xp = jnp.pad(x, ((0, 0), (1, 1), (1, 1), (0, 0)))
    cols = jnp.concatenate(
        [xp[:, dh:dh + h, dw:dw + width, :] for dh in range(3) for dw in range(3)],
        axis=-1)                                             # (N, H, W, 9*Cin_p)
    k = 9 * cin_p
    m = n * h * width
    cols = cols.reshape(m, k)

    tm = _m_tile(m)
    m_pad = -(-m // tm) * tm
    if m_pad != m:
        cols = jnp.pad(cols, ((0, m_pad - m), (0, 0)))

    out = pl.pallas_call(
        functools.partial(_gemm_bias_act_kernel, act_tanh=act_tanh),
        out_shape=jax.ShapeDtypeStruct((m_pad, cout), out_dtype),
        grid=(m_pad // tm,),
        in_specs=[
            pl.BlockSpec((tm, k), lambda i: (i, 0)),
            pl.BlockSpec((k, cout), lambda i: (0, 0)),       # resident weight
            pl.BlockSpec((1, cout), lambda i: (0, 0)),       # resident bias
        ],
        out_specs=pl.BlockSpec((tm, cout), lambda i: (i, 0)),
        compiler_params=pltpu.CompilerParams(
            dimension_semantics=("parallel",)),
    )(cols, wf, bf)

    return out[:m].reshape(n, h, width, cout)


# ---------------------------------------------------------------------------
# Pure-XLA reference for a single Conv2DBlock (used only for the self-check).
# ---------------------------------------------------------------------------
def _conv_ref(x, w, b, act_tanh):
    cin, cout = w.shape[1], w.shape[2]
    wk = w.reshape(3, 3, cin, cout).astype(jnp.float32)       # HWIO
    y = jax.lax.conv_general_dilated(
        x.astype(jnp.float32), wk, window_strides=(1, 1), padding="SAME",
        dimension_numbers=("NHWC", "HWIO", "NHWC"))
    y = y + b.astype(jnp.float32).reshape(1, 1, 1, cout)
    return jnp.tanh(y) if act_tanh else jnp.where(y >= 0.0, y, 0.2 * y)


# ---------------------------------------------------------------------------
# Bilinear resize, align_corners=True (matches F.interpolate semantics)
# TODO(synk): resize is gather/layout plumbing; kept in plain JAX glue.
# ---------------------------------------------------------------------------
def _resize_bilinear_ac(x, out_h, out_w):
    N, H, W, C = x.shape
    dtype = x.dtype

    def coords(o, i):
        if o == 1:
            return jnp.zeros((1,), jnp.float32)
        return jnp.arange(o, dtype=jnp.float32) * ((i - 1) / (o - 1))

    hy = coords(out_h, H)
    wx = coords(out_w, W)
    h0 = jnp.clip(jnp.floor(hy).astype(jnp.int32), 0, H - 1)
    h1 = jnp.clip(h0 + 1, 0, H - 1)
    w0 = jnp.clip(jnp.floor(wx).astype(jnp.int32), 0, W - 1)
    w1 = jnp.clip(w0 + 1, 0, W - 1)
    th = (hy - h0.astype(jnp.float32))[None, :, None, None]
    tw = (wx - w0.astype(jnp.float32))[None, None, :, None]

    r0 = jnp.take(x, h0, axis=1).astype(jnp.float32)
    r1 = jnp.take(x, h1, axis=1).astype(jnp.float32)

    def interp_w(r):
        c0 = jnp.take(r, w0, axis=2)
        c1 = jnp.take(r, w1, axis=2)
        return c0 * (1.0 - tw) + c1 * tw

    out = interp_w(r0) * (1.0 - th) + interp_w(r1) * th
    return out.astype(dtype)


def dn(x):
    N, H, W, C = x.shape
    return _resize_bilinear_ac(x, H // 2, W // 2)


def up(x):
    N, H, W, C = x.shape
    return _resize_bilinear_ac(x, H * 2, W * 2)


# ---------------------------------------------------------------------------
# Parameter init (deterministic, synthetic) + spectral normalization.
# TODO(synk): PyTorch spectral_norm keeps a persistent power-iteration vector u
# across forwards; here it is applied once at (synthetic) init.
# ---------------------------------------------------------------------------
def _spectral_normalize(w, key, n_iter=1, eps=1e-12):
    # w: (K, Cout). sigma is transpose-invariant vs PyTorch's (Cout, K) matrix.
    wm = w.T
    u = jax.random.normal(key, (wm.shape[0],), jnp.float32)
    u = u / (jnp.linalg.norm(u) + eps)
    v = None
    for _ in range(n_iter):
        v = wm.T @ u
        v = v / (jnp.linalg.norm(v) + eps)
        u = wm @ v
        u = u / (jnp.linalg.norm(u) + eps)
    sigma = u @ (wm @ v)
    return w / sigma


def _init_block(key, cin, cout, spectral=True):
    kw, kb, ku = jax.random.split(key, 3)
    fan_in = cin * 9
    bound = 1.0 / (fan_in ** 0.5)
    # weight as (3, 3, Cin, Cout) -> (9*Cin, Cout) (tap-major, channel-minor),
    # spectral-normalized, then stored per-tap as (9, Cin, Cout) for the kernel.
    w = jax.random.uniform(kw, (3, 3, cin, cout), jnp.float32, -bound, bound)
    w = w.reshape(9 * cin, cout)
    if spectral:
        w = _spectral_normalize(w, ku)
    w = w.reshape(9, cin, cout)
    b = jax.random.uniform(kb, (cout,), jnp.float32, -bound, bound)
    return w, b


def init_adn_params(key, num_inp_chans):
    fs = [num_inp_chans, 16, 32, 32, 64, 64]
    specs = [
        ("layer_0", fs[0], fs[1], True),
        ("layer_1", fs[1], fs[2], True),
        ("layer_2", fs[2], fs[3], True),
        ("layer_3", fs[3], fs[4], True),
        ("layer_4", fs[4], fs[5], True),
        ("decoder_4", fs[5], fs[4], True),
        ("decoder_3", fs[4] + fs[4], fs[3], True),
        ("decoder_2", fs[3] + fs[3], fs[2], True),
        ("decoder_1", fs[2] + fs[2], fs[1], True),
        ("output_conv", fs[1] + fs[1], 3, False),
    ]
    params = {}
    for i, (name, cin, cout, sn) in enumerate(specs):
        params[name] = _init_block(jax.random.fold_in(key, i), cin, cout, sn)
    return params


# ---------------------------------------------------------------------------
# Forward pass of AppearaceDecoderNetwork (U-Net style encoder/decoder)
# ---------------------------------------------------------------------------
def adn_forward(params, x):
    # x: (N, H, W, num_inp_chans)
    s0 = conv2d_block(x, *params["layer_0"])
    s1 = dn(conv2d_block(s0, *params["layer_1"]))
    s2 = dn(conv2d_block(s1, *params["layer_2"]))
    s3 = dn(conv2d_block(s2, *params["layer_3"]))
    s4 = dn(conv2d_block(s3, *params["layer_4"]))

    u4 = conv2d_block(up(s4), *params["decoder_4"])
    u3 = conv2d_block(up(jnp.concatenate([u4, s3], axis=-1)), *params["decoder_3"])
    u2 = conv2d_block(up(jnp.concatenate([u3, s2], axis=-1)), *params["decoder_2"])
    u1 = conv2d_block(up(jnp.concatenate([u2, s1], axis=-1)), *params["decoder_1"])
    u0 = conv2d_block(jnp.concatenate([u1, s0], axis=-1),
                      *params["output_conv"], act_tanh=True,
                      out_dtype=jnp.float32)
    return u0


if __name__ == "__main__":
    key = jax.random.PRNGKey(0)
    num_inp_chans = 4
    N, H, W = 2, 16, 16

    params = init_adn_params(key, num_inp_chans)
    x = jax.random.normal(jax.random.fold_in(key, 1234),
                          (N, H, W, num_inp_chans), jnp.float32)

    # --- correctness self-check for one Conv2DBlock vs XLA conv (same bf16 operands)
    w0, b0 = params["layer_0"]
    xb = x.astype(jnp.bfloat16).astype(jnp.float32)
    wb = w0.astype(jnp.bfloat16).astype(jnp.float32)
    got = conv2d_block(xb, wb, b0, act_tanh=False, out_dtype=jnp.float32)
    want = _conv_ref(xb, wb, b0, act_tanh=False)
    got, want = jax.block_until_ready((got, want))
    max_err = float(jnp.max(jnp.abs(got - want)))
    assert max_err < 5e-2, max_err

    # --- full forward
    out = jax.jit(adn_forward)(params, x)
    out = jax.block_until_ready(out)

    assert out.shape == (N, H, W, 3), out.shape
    assert out.dtype == jnp.float32
    assert bool(jnp.all(jnp.isfinite(out)))
    # tanh output range sanity
    assert float(jnp.max(jnp.abs(out))) <= 1.0 + 1e-6
    print("KERNEL_OK")
</pallas_src>

<mosaic_0001>
module attributes {stable_mosaic.version = 11 : i64} {
  func.func @_gemm_bias_act_kernel(%arg0: i32, %arg1: memref<512x72xbf16, #tpu.memory_space<vmem>>, %arg2: memref<72x16xbf16, #tpu.memory_space<vmem>>, %arg3: memref<1x16xf32, #tpu.memory_space<vmem>>, %arg4: memref<512x16xf32, #tpu.memory_space<vmem>>) attributes {dimension_semantics = [#tpu.dimension_semantics<parallel>], iteration_bounds = array<i64: 1>, scalar_prefetch = 0 : i64, scratch_operands = 0 : i64, tpu.core_type = #tpu.core_type<tc>, window_params = [{transform_indices = @transform_0, window_bounds = array<i64: 512, 72>}, {pipeline_mode = #tpu.pipeline_mode<synchronous>, transform_indices = @transform_1, window_bounds = array<i64: 72, 16>}, {pipeline_mode = #tpu.pipeline_mode<synchronous>, transform_indices = @transform_2, window_bounds = array<i64: 1, 16>}, {transform_indices = @transform_3, window_bounds = array<i64: 512, 16>}]} {
    %c0 = arith.constant 0 : index
    %c0_0 = arith.constant 0 : index
    %0 = vector.load %arg1[%c0, %c0_0] : memref<512x72xbf16, #tpu.memory_space<vmem>>, vector<512x72xbf16>
    %c0_1 = arith.constant 0 : index
    %c0_2 = arith.constant 0 : index
    %1 = vector.load %arg2[%c0_1, %c0_2] : memref<72x16xbf16, #tpu.memory_space<vmem>>, vector<72x16xbf16>
    %cst = arith.constant dense<0.000000e+00> : vector<512x16xf32>
    %2 = tpu.matmul %0, %1, %cst {dimension_numbers = #tpu.dot_dimension_numbers<[1], [0], [0], [1], [0, 0, 1, 1], [], []>} : vector<512x72xbf16>, vector<72x16xbf16>, vector<512x16xf32> -> vector<512x16xf32>
    %c0_3 = arith.constant 0 : index
    %c0_4 = arith.constant 0 : index
    %3 = vector.load %arg3[%c0_3, %c0_4] : memref<1x16xf32, #tpu.memory_space<vmem>>, vector<1x16xf32>
    %4 = vector.broadcast %3 : vector<1x16xf32> to vector<512x16xf32>
    %5 = arith.addf %2, %4 : vector<512x16xf32>
    %cst_5 = arith.constant 0.000000e+00 : f32
    %6 = vector.broadcast %cst_5 : f32 to vector<512x16xf32>
    %7 = arith.cmpf oge, %5, %6 : vector<512x16xf32>
    %cst_6 = arith.constant 2.000000e-01 : f32
    %8 = vector.broadcast %cst_6 : f32 to vector<512x16xf32>
    %9 = arith.mulf %8, %5 : vector<512x16xf32>
    %10 = arith.select %7, %5, %9 : vector<512x16xi1>, vector<512x16xf32>
    %c0_7 = arith.constant 0 : index
    %c0_8 = arith.constant 0 : index
    %11 = vector.load %arg4[%c0_7, %c0_8] : memref<512x16xf32, #tpu.memory_space<vmem>>, vector<512x16xf32>
    tpu.vector_store %arg4[%c0_7, %c0_8], %10 {strides = array<i32>} : memref<512x16xf32, #tpu.memory_space<vmem>>, vector<512x16xf32>,
    return
  }
  func.func @transform_0(%arg0: i32) -> (i32, i32) {
    %c0_i32 = arith.constant 0 : i32
    %c0_i32_0 = arith.constant 0 : i32
    return %arg0, %c0_i32 : i32, i32
  }
  func.func @transform_1(%arg0: i32) -> (i32, i32) {
    %c0_i32 = arith.constant 0 : i32
    %c0_i32_0 = arith.constant 0 : i32
    %c0_i32_1 = arith.constant 0 : i32
    return %c0_i32, %c0_i32_0 : i32, i32
  }
  func.func @transform_2(%arg0: i32) -> (i32, i32) {
    %c0_i32 = arith.constant 0 : i32
    %c0_i32_0 = arith.constant 0 : i32
    %c0_i32_1 = arith.constant 0 : i32
    return %c0_i32, %c0_i32_0 : i32, i32
  }
  func.func @transform_3(%arg0: i32) -> (i32, i32) {
    %c0_i32 = arith.constant 0 : i32
    %c0_i32_0 = arith.constant 0 : i32
    return %arg0, %c0_i32 : i32, i32
  }
}

</mosaic_0001>

<llo_original>
// kernel: tpu_custom_call.1
$region0: #{tpu_custom_call.1}
  #allocation0 [shape = 'u32[]', space=smem, size = 0x4, offset = 0x4, fixed_abs, tag = 'smem constant byte address 0x4 - core index']
  #allocation1 [shape = 'u32[144,128]{1,0:T(1,128)}', space=vmem, size = 0x12000, scoped, tag = 'internal scratch']
  %s0 = inlined_call_operand.vmem [shape: bf16[512,72], index: 0, kind: input, shape index: {}]
  %s1 = inlined_call_operand.vmem [shape: bf16[72,16], index: 1, kind: input, shape index: {}]
  %s2 = inlined_call_operand.vmem [shape: f32[1,16], index: 2, kind: input, shape index: {}]
  %s3 = inlined_call_operand.vmem [shape: f32[512,16], index: 3, kind: output, shape index: {}]
  %s4 = sld [smem:[#allocation0]]
  $region22: #{tpu_custom_call.1} parent=0
    _
  %s6 = ssub.s32 1, %s4
  %s7 = scalar_select 0, %s6, %s4
  // Predicated region
  $region2: #{tpu_custom_call.1} parent=0 // pred_check
    _
  $region3: #{tpu_custom_call.1} parent=0 // pred_check_branch
    %9 = sbr.rel (0) target = $region5
  $region4: #{tpu_custom_call.1} parent=0 // pred_region
    _
  $region5: #{tpu_custom_call.1} parent=0 // pred_fallthru
    _
  // Predicated region
  $region6: #{tpu_custom_call.1} parent=0 // pred_check
    _
  $region7: #{tpu_custom_call.1} parent=0 // pred_check_branch
    %11 = sbr.rel (0) target = $region9
  $region8: #{tpu_custom_call.1} parent=0 // pred_region
    _
  $region9: #{tpu_custom_call.1} parent=0 // pred_fallthru
    _
  // Predicated region
  $region10: #{tpu_custom_call.1} parent=0 // pred_check
    _
  $region11: #{tpu_custom_call.1} parent=0 // pred_check_branch
    %13 = sbr.rel (0) target = $region13
  $region12: #{tpu_custom_call.1} parent=0 // pred_region
    _
  $region13: #{tpu_custom_call.1} parent=0 // pred_fallthru
    _
  %v15 = vld [vmem:[%s0] sm:$0xf]
  %v16 = vld [vmem:[%s0 + $0x4] sm:$0xf]
  %v17 = vld [vmem:[%s0 + $0x8] sm:$0xf]
  %v18 = vld [vmem:[%s0 + $0xc] sm:$0xf]
  %v19 = vld [vmem:[%s0 + $0x10] sm:$0xf]
  %v20 = vld [vmem:[%s0 + $0x14] sm:$0xf]
  %v21 = vld [vmem:[%s0 + $0x18] sm:$0xf]
  %v22 = vld [vmem:[%s0 + $0x1c] sm:$0xf]
  %v23 = vld [vmem:[%s0 + $0x20] sm:$0xf]
  %v24 = vld [vmem:[%s0 + $0x24] sm:$0xf]
  %v25 = vld [vmem:[%s0 + $0x28] sm:$0xf]
  %v26 = vld [vmem:[%s0 + $0x2c] sm:$0xf]
  %v27 = vld [vmem:[%s0 + $0x30] sm:$0xf]
  %v28 = vld [vmem:[%s0 + $0x34] sm:$0xf]
  %v29 = vld [vmem:[%s0 + $0x38] sm:$0xf]
  %v30 = vld [vmem:[%s0 + $0x3c] sm:$0xf]
  %v31 = vld [vmem:[%s0 + $0x40] sm:$0xf]
  %v32 = vld [vmem:[%s0 + $0x44] sm:$0xf]
  %v33 = vld [vmem:[%s0 + $0x48] sm:$0xf]
  %v34 = vld [vmem:[%s0 + $0x4c] sm:$0xf]
  %v35 = vld [vmem:[%s0 + $0x50] sm:$0xf]
  %v36 = vld [vmem:[%s0 + $0x54] sm:$0xf]
  %v37 = vld [vmem:[%s0 + $0x58] sm:$0xf]
  %v38 = vld [vmem:[%s0 + $0x5c] sm:$0xf]
  %v39 = vld [vmem:[%s0 + $0x60] sm:$0xf]
  %v40 = vld [vmem:[%s0 + $0x64] sm:$0xf]
  %v41 = vld [vmem:[%s0 + $0x68] sm:$0xf]
  %v42 = vld [vmem:[%s0 + $0x6c] sm:$0xf]
  %v43 = vld [vmem:[%s0 + $0x70] sm:$0xf]
  %v44 = vld [vmem:[%s0 + $0x74] sm:$0xf]
  %v45 = vld [vmem:[%s0 + $0x78] sm:$0xf]
  %v46 = vld [vmem:[%s0 + $0x7c] sm:$0xf]
  %v47 = vld [vmem:[%s0 + $0x80] sm:$0xf]
  %v48 = vld [vmem:[%s0 + $0x84] sm:$0xf]
  %v49 = vld [vmem:[%s0 + $0x88] sm:$0xf]
  %v50 = vld [vmem:[%s0 + $0x8c] sm:$0xf]
  %v51 = vld [vmem:[%s0 + $0x90] sm:$0xf]
  %v52 = vld [vmem:[%s0 + $0x94] sm:$0xf]
  %v53 = vld [vmem:[%s0 + $0x98] sm:$0xf]
  %v54 = vld [vmem:[%s0 + $0x9c] sm:$0xf]
  %v55 = vld [vmem:[%s0 + $0xa0] sm:$0xf]
  %v56 = vld [vmem:[%s0 + $0xa4] sm:$0xf]
  %v57 = vld [vmem:[%s0 + $0xa8] sm:$0xf]
  %v58 = vld [vmem:[%s0 + $0xac] sm:$0xf]
  %v59 = vld [vmem:[%s0 + $0xb0] sm:$0xf]
  %v60 = vld [vmem:[%s0 + $0xb4] sm:$0xf]
  %v61 = vld [vmem:[%s0 + $0xb8] sm:$0xf]
  %v62 = vld [vmem:[%s0 + $0xbc] sm:$0xf]
  %v63 = vld [vmem:[%s0 + $0xc0] sm:$0xf]
  %v64 = vld [vmem:[%s0 + $0xc4] sm:$0xf]
  %v65 = vld [vmem:[%s0 + $0xc8] sm:$0xf]
  %v66 = vld [vmem:[%s0 + $0xcc] sm:$0xf]
  %v67 = vld [vmem:[%s0 + $0xd0] sm:$0xf]
  %v68 = vld [vmem:[%s0 + $0xd4] sm:$0xf]
  %v69 = vld [vmem:[%s0 + $0xd8] sm:$0xf]
  %v70 = vld [vmem:[%s0 + $0xdc] sm:$0xf]
  %v71 = vld [vmem:[%s0 + $0xe0] sm:$0xf]
  %v72 = vld [vmem:[%s0 + $0xe4] sm:$0xf]
  %v73 = vld [vmem:[%s0 + $0xe8] sm:$0xf]
  %v74 = vld [vmem:[%s0 + $0xec] sm:$0xf]
  %v75 = vld [vmem:[%s0 + $0xf0] sm:$0xf]
  %v76 = vld [vmem:[%s0 + $0xf4] sm:$0xf]
  %v77 = vld [vmem:[%s0 + $0xf8] sm:$0xf]
  %v78 = vld [vmem:[%s0 + $0xfc] sm:$0xf]
  %v79 = vld [vmem:[%s1] sm:$0xf]
  %v80 = vld [vmem:[%s1 + $0x4] sm:$0xf]
  %v81 = vld [vmem:[%s1 + $0x8] sm:$0xf]
  %v82 = vld [vmem:[%s1 + $0xc] sm:$0xf]
  %v83 = vld [vmem:[%s1 + $0x10] sm:$0xf]
  %v84 = vld [vmem:[%s1 + $0x14] sm:$0xf]
  %v85 = vld [vmem:[%s1 + $0x18] sm:$0xf]
  %v86 = vld [vmem:[%s1 + $0x1c] sm:$0xf]
  %v87 = vld [vmem:[%s1 + $0x20] sm:$0xf]
  %v88 = vld [vmem:[%s2] sm:$0x1]
  %v90 = vlaneseq
  %v91 = vshrl.u32 %v90, 7
  %v92 = vsub.s32 0, %v91
  %v93 = vrot.slane %v88, %v92
  %v159 = vunpack.c.l.b16 %v15
  %v160 = vunpack.c.l.b16 %v16
  %v161 = vunpack.c.l.b16 %v17
  %v162 = vunpack.c.l.b16 %v18
  %v163 = vunpack.c.l.b16 %v19
  %v164 = vunpack.c.l.b16 %v20
  %v165 = vunpack.c.l.b16 %v21
  %v166 = vunpack.c.l.b16 %v22
  %v167 = vunpack.c.l.b16 %v23
  %v168 = vunpack.c.l.b16 %v24
  %v169 = vunpack.c.l.b16 %v25
  %v170 = vunpack.c.l.b16 %v26
  %v171 = vunpack.c.l.b16 %v27
  %v172 = vunpack.c.l.b16 %v28
  %v173 = vunpack.c.l.b16 %v29
  %v174 = vunpack.c.l.b16 %v30
  %v175 = vunpack.c.l.b16 %v31
  %v176 = vunpack.c.l.b16 %v32
  %v177 = vunpack.c.l.b16 %v33
  %v178 = vunpack.c.l.b16 %v34
  %v179 = vunpack.c.l.b16 %v35
  %v180 = vunpack.c.l.b16 %v36
  %v181 = vunpack.c.l.b16 %v37
  %v182 = vunpack.c.l.b16 %v38
  %v183 = vunpack.c.l.b16 %v39
  %v184 = vunpack.c.l.b16 %v40
  %v185 = vunpack.c.l.b16 %v41
  %v186 = vunpack.c.l.b16 %v42
  %v187 = vunpack.c.l.b16 %v43
  %v188 = vunpack.c.l.b16 %v44
  %v189 = vunpack.c.l.b16 %v45
  %v190 = vunpack.c.l.b16 %v46
  %v191 = vunpack.c.l.b16 %v47
  %v192 = vunpack.c.l.b16 %v48
  %v193 = vunpack.c.l.b16 %v49
  %v194 = vunpack.c.l.b16 %v50
  %v195 = vunpack.c.l.b16 %v51
  %v196 = vunpack.c.l.b16 %v52
  %v197 = vunpack.c.l.b16 %v53
  %v198 = vunpack.c.l.b16 %v54
  %v199 = vunpack.c.l.b16 %v55
  %v200 = vunpack.c.l.b16 %v56
  %v201 = vunpack.c.l.b16 %v57
  %v202 = vunpack.c.l.b16 %v58
  %v203 = vunpack.c.l.b16 %v59
  %v204 = vunpack.c.l.b16 %v60
  %v205 = vunpack.c.l.b16 %v61
  %v206 = vunpack.c.l.b16 %v62
  %v207 = vunpack.c.l.b16 %v63
  %v208 = vunpack.c.l.b16 %v64
  %v209 = vunpack.c.l.b16 %v65
  %v210 = vunpack.c.l.b16 %v66
  %v211 = vunpack.c.l.b16 %v67
  %v212 = vunpack.c.l.b16 %v68
  %v213 = vunpack.c.l.b16 %v69
  %v214 = vunpack.c.l.b16 %v70
  %v215 = vunpack.c.l.b16 %v71
  %v216 = vunpack.c.l.b16 %v72
  %v217 = vunpack.c.l.b16 %v73
  %v218 = vunpack.c.l.b16 %v74
  %v219 = vunpack.c.l.b16 %v75
  %v220 = vunpack.c.l.b16 %v76
  %v221 = vunpack.c.l.b16 %v77
  %v222 = vunpack.c.l.b16 %v78
  %v223 = vpack.c.b16 %v160, %v159
  %v224 = vpack.c.b16 %v162, %v161
  %v225 = vpack.c.b16 %v164, %v163
  %v226 = vpack.c.b16 %v166, %v165
  %v227 = vpack.c.b16 %v168, %v167
  %v228 = vpack.c.b16 %v170, %v169
  %v229 = vpack.c.b16 %v172, %v171
  %v230 = vpack.c.b16 %v174, %v173
  %v231 = vpack.c.b16 %v176, %v175
  %v232 = vpack.c.b16 %v178, %v177
  %v233 = vpack.c.b16 %v180, %v179
  %v234 = vpack.c.b16 %v182, %v181
  %v235 = vpack.c.b16 %v184, %v183
  %v236 = vpack.c.b16 %v186, %v185
  %v237 = vpack.c.b16 %v188, %v187
  %v238 = vpack.c.b16 %v190, %v189
  %v239 = vpack.c.b16 %v192, %v191
  %v240 = vpack.c.b16 %v194, %v193
  %v241 = vpack.c.b16 %v196, %v195
  %v242 = vpack.c.b16 %v198, %v197
  %v243 = vpack.c.b16 %v200, %v199
  %v244 = vpack.c.b16 %v202, %v201
  %v245 = vpack.c.b16 %v204, %v203
  %v246 = vpack.c.b16 %v206, %v205
  %v247 = vpack.c.b16 %v208, %v207
  %v248 = vpack.c.b16 %v210, %v209
  %v249 = vpack.c.b16 %v212, %v211
  %v250 = vpack.c.b16 %v214, %v213
  %v251 = vpack.c.b16 %v216, %v215
  %v252 = vpack.c.b16 %v218, %v217
  %v253 = vpack.c.b16 %v220, %v219
  %v254 = vpack.c.b16 %v222, %v221
  %v264 = vunpack.c.l.b16 %v79
  %v265 = vunpack.c.l.b16 %v80
  %v266 = vunpack.c.l.b16 %v81
  %v267 = vunpack.c.l.b16 %v82
  %v268 = vunpack.c.l.b16 %v83
  %v269 = vunpack.c.l.b16 %v84
  %v270 = vunpack.c.l.b16 %v85
  %v271 = vunpack.c.l.b16 %v86
  %v272 = vunpack.c.l.b16 %v87
  %v273 = vpack.c.b16 %v265, %v264
  %v274 = vpack.c.b16 %v267, %v266
  %v275 = vpack.c.b16 %v269, %v268
  %v276 = vpack.c.b16 %v271, %v270
  %v277 = vpack.c.b16 %v272, %v272
  %vm282 = vcmask 588800
  %v284 = vsel %vm282, %v223, 0
  %v287 = vsel %vm282, %v224, 0
  %v290 = vsel %vm282, %v225, 0
  %v293 = vsel %vm282, %v226, 0
  %v296 = vsel %vm282, %v227, 0
  %v299 = vsel %vm282, %v228, 0
  %v302 = vsel %vm282, %v229, 0
  %v305 = vsel %vm282, %v230, 0
  %v308 = vsel %vm282, %v231, 0
  %v311 = vsel %vm282, %v232, 0
  %v314 = vsel %vm282, %v233, 0
  %v317 = vsel %vm282, %v234, 0
  %v320 = vsel %vm282, %v235, 0
  %v323 = vsel %vm282, %v236, 0
  %v326 = vsel %vm282, %v237, 0
  %v329 = vsel %vm282, %v238, 0
  %v332 = vsel %vm282, %v239, 0
  %v335 = vsel %vm282, %v240, 0
  %v338 = vsel %vm282, %v241, 0
  %v341 = vsel %vm282, %v242, 0
  %v344 = vsel %vm282, %v243, 0
  %v347 = vsel %vm282, %v244, 0
  %v350 = vsel %vm282, %v245, 0
  %v353 = vsel %vm282, %v246, 0
  %v356 = vsel %vm282, %v247, 0
  %v359 = vsel %vm282, %v248, 0
  %v362 = vsel %vm282, %v249, 0
  %v365 = vsel %vm282, %v250, 0
  %v368 = vsel %vm282, %v251, 0
  %v371 = vsel %vm282, %v252, 0
  %v374 = vsel %vm282, %v253, 0
  %v377 = vsel %vm282, %v254, 0
  %vm379 = vcmask 1043456
  %v381 = vsel %vm379, %v277, 0
  %383 = vmatprep.subr.bf16.mxu0 0
  %384 = vmatpush1.bf16.msra.mxu0 %v273
  %385 = vmatprep.subr.bf16.mxu0 0
  %386 = vmatpush1.bf16.msra.mxu0 %v274
  %387 = vmatprep.subr.bf16.mxu0 0
  %388 = vmatpush1.bf16.msra.mxu0 %v275
  %389 = vmatprep.subr.bf16.mxu0 0
  %390 = vmatpush1.bf16.msra.mxu0 %v276
  %391 = vmatprep.subr.bf16.mxu0 0
  %392 = vmatpush1.bf16.msra.mxu0 %v381
  %393 = vmatprep.subr.bf16.mxu0 0
  %394 = vmatpush1.bf16.msra.mxu0 0
  %395 = vmatprep.subr.bf16.mxu0 0
  %396 = vmatpush1.bf16.msra.mxu0 0
  %397 = vmatprep.subr.bf16.mxu0 0
  %398 = vmatpush1.bf16.msra.mxu0 0
  %399 = vmatprep.subr.bf16.mxu0 0
  %400 = vmatpush1.bf16.msra.mxu0 0
  %401 = vmatprep.subr.bf16.mxu0 0
  %402 = vmatpush1.bf16.msra.mxu0 0
  %403 = vmatprep.subr.bf16.mxu0 0
  %404 = vmatpush1.bf16.msra.mxu0 0
  %405 = vmatprep.subr.bf16.mxu0 0
  %406 = vmatpush1.bf16.msra.mxu0 0
  %407 = vmatprep.subr.bf16.mxu0 0
  %408 = vmatpush1.bf16.msra.mxu0 0
  %409 = vmatprep.subr.bf16.mxu0 0
  %410 = vmatpush1.bf16.msra.mxu0 0
  %411 = vmatprep.subr.bf16.mxu0 0
  %412 = vmatpush1.bf16.msra.mxu0 0
  %413 = vmatprep.subr.bf16.mxu0 0
  %414 = vmatpush1.bf16.msra.mxu0 0
  %415 = vmatprep.mubr.bf16.mxu0 0
  %416 = vmatmul.mubr.bf16.gmra.mrb[0].mxu0 %v284
  %v417 = vpop.f32.mrb[0].mxu0
  %v418 = vadd.f32 %v93, %v417
  %v419 = vpop.f32.mrb[0].mxu0
  %v420 = vpop.f32.mrb[0].mxu0
  %v421 = vadd.f32 %v93, %v420
  %v422 = vpop.f32.mrb[0].mxu0
  %423 = vmatprep.mubr.bf16.mxu0 0
  %424 = vmatmul.mubr.bf16.gmra.mrb[0].mxu0 %v287
  %v425 = vpop.f32.mrb[0].mxu0
  %v426 = vadd.f32 %v93, %v425
  %v427 = vpop.f32.mrb[0].mxu0
  %v428 = vpop.f32.mrb[0].mxu0
  %v429 = vadd.f32 %v93, %v428
  %v430 = vpop.f32.mrb[0].mxu0
  %431 = vmatprep.mubr.bf16.mxu0 0
  %432 = vmatmul.mubr.bf16.gmra.mrb[0].mxu0 %v290
  %v433 = vpop.f32.mrb[0].mxu0
  %v434 = vadd.f32 %v93, %v433
  %v435 = vpop.f32.mrb[0].mxu0
  %v436 = vpop.f32.mrb[0].mxu0
  %v437 = vadd.f32 %v93, %v436
  %v438 = vpop.f32.mrb[0].mxu0
  %439 = vmatprep.mubr.bf16.mxu0 0
  %440 = vmatmul.mubr.bf16.gmra.mrb[0].mxu0 %v293
  %v441 = vpop.f32.mrb[0].mxu0
  %v442 = vadd.f32 %v93, %v441
  %v443 = vpop.f32.mrb[0].mxu0
  %v444 = vpop.f32.mrb[0].mxu0
  %v445 = vadd.f32 %v93, %v444
  %v446 = vpop.f32.mrb[0].mxu0
  %447 = vmatprep.mubr.bf16.mxu0 0
  %448 = vmatmul.mubr.bf16.gmra.mrb[0].mxu0 %v296
  %v449 = vpop.f32.mrb[0].mxu0
  %v450 = vadd.f32 %v93, %v449
  %v451 = vpop.f32.mrb[0].mxu0
  %v452 = vpop.f32.mrb[0].mxu0
  %v453 = vadd.f32 %v93, %v452
  %v454 = vpop.f32.mrb[0].mxu0
  %455 = vmatprep.mubr.bf16.mxu0 0
  %456 = vmatmul.mubr.bf16.gmra.mrb[0].mxu0 %v299
  %v457 = vpop.f32.mrb[0].mxu0
  %v458 = vadd.f32 %v93, %v457
  %v459 = vpop.f32.mrb[0].mxu0
  %v460 = vpop.f32.mrb[0].mxu0
  %v461 = vadd.f32 %v93, %v460
  %v462 = vpop.f32.mrb[0].mxu0
  %463 = vmatprep.mubr.bf16.mxu0 0
  %464 = vmatmul.mubr.bf16.gmra.mrb[0].mxu0 %v302
  %v465 = vpop.f32.mrb[0].mxu0
  %v466 = vadd.f32 %v93, %v465
  %v467 = vpop.f32.mrb[0].mxu0
  %v468 = vpop.f32.mrb[0].mxu0
  %v469 = vadd.f32 %v93, %v468
  %v470 = vpop.f32.mrb[0].mxu0
  %471 = vmatprep.mubr.bf16.mxu0 0
  %472 = vmatmul.mubr.bf16.gmra.mrb[0].mxu0 %v305
  %v473 = vpop.f32.mrb[0].mxu0
  %v474 = vadd.f32 %v93, %v473
  %v475 = vpop.f32.mrb[0].mxu0
  %v476 = vpop.f32.mrb[0].mxu0
  %v477 = vadd.f32 %v93, %v476
  %v478 = vpop.f32.mrb[0].mxu0
  %479 = vmatprep.mubr.bf16.mxu0 0
  %480 = vmatmul.mubr.bf16.gmra.mrb[0].mxu0 %v308
  %v481 = vpop.f32.mrb[0].mxu0
  %v482 = vadd.f32 %v93, %v481
  %v483 = vpop.f32.mrb[0].mxu0
  %v484 = vpop.f32.mrb[0].mxu0
  %v485 = vadd.f32 %v93, %v484
  %v486 = vpop.f32.mrb[0].mxu0
  %487 = vmatprep.mubr.bf16.mxu0 0
  %488 = vmatmul.mubr.bf16.gmra.mrb[0].mxu0 %v311
  %v489 = vpop.f32.mrb[0].mxu0
  %v490 = vadd.f32 %v93, %v489
  %v491 = vpop.f32.mrb[0].mxu0
  %v492 = vpop.f32.mrb[0].mxu0
  %v493 = vadd.f32 %v93, %v492
  %v494 = vpop.f32.mrb[0].mxu0
  %495 = vmatprep.mubr.bf16.mxu0 0
  %496 = vmatmul.mubr.bf16.gmra.mrb[0].mxu0 %v314
  %v497 = vpop.f32.mrb[0].mxu0
  %v498 = vadd.f32 %v93, %v497
  %v499 = vpop.f32.mrb[0].mxu0
  %v500 = vpop.f32.mrb[0].mxu0
  %v501 = vadd.f32 %v93, %v500
  %v502 = vpop.f32.mrb[0].mxu0
  %503 = vmatprep.mubr.bf16.mxu0 0
  %504 = vmatmul.mubr.bf16.gmra.mrb[0].mxu0 %v317
  %v505 = vpop.f32.mrb[0].mxu0
  %v506 = vadd.f32 %v93, %v505
  %v507 = vpop.f32.mrb[0].mxu0
  %v508 = vpop.f32.mrb[0].mxu0
  %v509 = vadd.f32 %v93, %v508
  %v510 = vpop.f32.mrb[0].mxu0
  %511 = vmatprep.mubr.bf16.mxu0 0
  %512 = vmatmul.mubr.bf16.gmra.mrb[0].mxu0 %v320
  %v513 = vpop.f32.mrb[0].mxu0
  %v514 = vadd.f32 %v93, %v513
  %v515 = vpop.f32.mrb[0].mxu0
  %v516 = vpop.f32.mrb[0].mxu0
  %v517 = vadd.f32 %v93, %v516
  %v518 = vpop.f32.mrb[0].mxu0
  %519 = vmatprep.mubr.bf16.mxu0 0
  %520 = vmatmul.mubr.bf16.gmra.mrb[0].mxu0 %v323
  %v521 = vpop.f32.mrb[0].mxu0
  %v522 = vadd.f32 %v93, %v521
  %v523 = vpop.f32.mrb[0].mxu0
  %v524 = vpop.f32.mrb[0].mxu0
  %v525 = vadd.f32 %v93, %v524
  %v526 = vpop.f32.mrb[0].mxu0
  %527 = vmatprep.mubr.bf16.mxu0 0
  %528 = vmatmul.mubr.bf16.gmra.mrb[0].mxu0 %v326
  %v529 = vpop.f32.mrb[0].mxu0
  %v530 = vadd.f32 %v93, %v529
  %v531 = vpop.f32.mrb[0].mxu0
  %v532 = vpop.f32.mrb[0].mxu0
  %v533 = vadd.f32 %v93, %v532
  %v534 = vpop.f32.mrb[0].mxu0
  %535 = vmatprep.mubr.bf16.mxu0 0
  %536 = vmatmul.mubr.bf16.gmra.mrb[0].mxu0 %v329
  %v537 = vpop.f32.mrb[0].mxu0
  %v538 = vadd.f32 %v93, %v537
  %v539 = vpop.f32.mrb[0].mxu0
  %v540 = vpop.f32.mrb[0].mxu0
  %v541 = vadd.f32 %v93, %v540
  %v542 = vpop.f32.mrb[0].mxu0
  %543 = vmatprep.mubr.bf16.mxu0 0
  %544 = vmatmul.mubr.bf16.gmra.mrb[0].mxu0 %v332
  %v545 = vpop.f32.mrb[0].mxu0
  %v546 = vadd.f32 %v93, %v545
  %v547 = vpop.f32.mrb[0].mxu0
  %v548 = vpop.f32.mrb[0].mxu0
  %v549 = vadd.f32 %v93, %v548
  %v550 = vpop.f32.mrb[0].mxu0
  %551 = vmatprep.mubr.bf16.mxu0 0
  %552 = vmatmul.mubr.bf16.gmra.mrb[0].mxu0 %v335
  %v553 = vpop.f32.mrb[0].mxu0
  %v554 = vadd.f32 %v93, %v553
  %v555 = vpop.f32.mrb[0].mxu0
  %v556 = vpop.f32.mrb[0].mxu0
  %v557 = vadd.f32 %v93, %v556
  %v558 = vpop.f32.mrb[0].mxu0
  %559 = vmatprep.mubr.bf16.mxu0 0
  %560 = vmatmul.mubr.bf16.gmra.mrb[0].mxu0 %v338
  %v561 = vpop.f32.mrb[0].mxu0
  %v562 = vadd.f32 %v93, %v561
  %v563 = vpop.f32.mrb[0].mxu0
  %v564 = vpop.f32.mrb[0].mxu0
  %v565 = vadd.f32 %v93, %v564
  %v566 = vpop.f32.mrb[0].mxu0
  %567 = vmatprep.mubr.bf16.mxu0 0
  %568 = vmatmul.mubr.bf16.gmra.mrb[0].mxu0 %v341
  %v569 = vpop.f32.mrb[0].mxu0
  %v570 = vadd.f32 %v93, %v569
  %v571 = vpop.f32.mrb[0].mxu0
  %v572 = vpop.f32.mrb[0].mxu0
  %v573 = vadd.f32 %v93, %v572
  %v574 = vpop.f32.mrb[0].mxu0
  %575 = vmatprep.mubr.bf16.mxu0 0
  %576 = vmatmul.mubr.bf16.gmra.mrb[0].mxu0 %v344
  %v577 = vpop.f32.mrb[0].mxu0
  %v578 = vadd.f32 %v93, %v577
  %v579 = vpop.f32.mrb[0].mxu0
  %v580 = vpop.f32.mrb[0].mxu0
  %v581 = vadd.f32 %v93, %v580
  %v582 = vpop.f32.mrb[0].mxu0
  %583 = vmatprep.mubr.bf16.mxu0 0
  %584 = vmatmul.mubr.bf16.gmra.mrb[0].mxu0 %v347
  %v585 = vpop.f32.mrb[0].mxu0
  %v586 = vadd.f32 %v93, %v585
  %v587 = vpop.f32.mrb[0].mxu0
  %v588 = vpop.f32.mrb[0].mxu0
  %v589 = vadd.f32 %v93, %v588
  %v590 = vpop.f32.mrb[0].mxu0
  %591 = vmatprep.mubr.bf16.mxu0 0
  %592 = vmatmul.mubr.bf16.gmra.mrb[0].mxu0 %v350
  %v593 = vpop.f32.mrb[0].mxu0
  %v594 = vadd.f32 %v93, %v593
  %v595 = vpop.f32.mrb[0].mxu0
  %v596 = vpop.f32.mrb[0].mxu0
  %v597 = vadd.f32 %v93, %v596
  %v598 = vpop.f32.mrb[0].mxu0
  %599 = vmatprep.mubr.bf16.mxu0 0
  %600 = vmatmul.mubr.bf16.gmra.mrb[0].mxu0 %v353
  %v601 = vpop.f32.mrb[0].mxu0
  %v602 = vadd.f32 %v93, %v601
  %v603 = vpop.f32.mrb[0].mxu0
  %v604 = vpop.f32.mrb[0].mxu0
  %v605 = vadd.f32 %v93, %v604
  %v606 = vpop.f32.mrb[0].mxu0
  %607 = vmatprep.mubr.bf16.mxu0 0
  %608 = vmatmul.mubr.bf16.gmra.mrb[0].mxu0 %v356
  %v609 = vpop.f32.mrb[0].mxu0
  %v610 = vadd.f32 %v93, %v609
  %v611 = vpop.f32.mrb[0].mxu0
  %v612 = vpop.f32.mrb[0].mxu0
  %v613 = vadd.f32 %v93, %v612
  %v614 = vpop.f32.mrb[0].mxu0
  %615 = vmatprep.mubr.bf16.mxu0 0
  %616 = vmatmul.mubr.bf16.gmra.mrb[0].mxu0 %v359
  %v617 = vpop.f32.mrb[0].mxu0
  %v618 = vadd.f32 %v93, %v617
  %v619 = vpop.f32.mrb[0].mxu0
  %v620 = vpop.f32.mrb[0].mxu0
  %v621 = vadd.f32 %v93, %v620
  %v622 = vpop.f32.mrb[0].mxu0
  %623 = vmatprep.mubr.bf16.mxu0 0
  %624 = vmatmul.mubr.bf16.gmra.mrb[0].mxu0 %v362
  %v625 = vpop.f32.mrb[0].mxu0
  %v626 = vadd.f32 %v93, %v625
  %v627 = vpop.f32.mrb[0].mxu0
  %v628 = vpop.f32.mrb[0].mxu0
  %v629 = vadd.f32 %v93, %v628
  %v630 = vpop.f32.mrb[0].mxu0
  %631 = vmatprep.mubr.bf16.mxu0 0
  %632 = vmatmul.mubr.bf16.gmra.mrb[0].mxu0 %v365
  %v633 = vpop.f32.mrb[0].mxu0
  %v634 = vadd.f32 %v93, %v633
  %v635 = vpop.f32.mrb[0].mxu0
  %v636 = vpop.f32.mrb[0].mxu0
  %v637 = vadd.f32 %v93, %v636
  %v638 = vpop.f32.mrb[0].mxu0
  %639 = vmatprep.mubr.bf16.mxu0 0
  %640 = vmatmul.mubr.bf16.gmra.mrb[0].mxu0 %v368
  %v641 = vpop.f32.mrb[0].mxu0
  %v642 = vadd.f32 %v93, %v641
  %v643 = vpop.f32.mrb[0].mxu0
  %v644 = vpop.f32.mrb[0].mxu0
  %v645 = vadd.f32 %v93, %v644
  %v646 = vpop.f32.mrb[0].mxu0
  %647 = vmatprep.mubr.bf16.mxu0 0
  %648 = vmatmul.mubr.bf16.gmra.mrb[0].mxu0 %v371
  %v649 = vpop.f32.mrb[0].mxu0
  %v650 = vadd.f32 %v93, %v649
  %v651 = vpop.f32.mrb[0].mxu0
  %v652 = vpop.f32.mrb[0].mxu0
  %v653 = vadd.f32 %v93, %v652
  %v654 = vpop.f32.mrb[0].mxu0
  %655 = vmatprep.mubr.bf16.mxu0 0
  %656 = vmatmul.mubr.bf16.gmra.mrb[0].mxu0 %v374
  %v657 = vpop.f32.mrb[0].mxu0
  %v658 = vadd.f32 %v93, %v657
  %v659 = vpop.f32.mrb[0].mxu0
  %v660 = vpop.f32.mrb[0].mxu0
  %v661 = vadd.f32 %v93, %v660
  %v662 = vpop.f32.mrb[0].mxu0
  %663 = vmatprep.mubr.bf16.mxu0 0
  %664 = vmatmul.mubr.bf16.gmra.mrb[0].mxu0 %v377
  %v665 = vpop.f32.mrb[0].mxu0
  %v666 = vadd.f32 %v93, %v665
  %v667 = vpop.f32.mrb[0].mxu0
  %v668 = vpop.f32.mrb[0].mxu0
  %v669 = vadd.f32 %v93, %v668
  %v670 = vpop.f32.mrb[0].mxu0
  %671 = vdwg.mxu0
  %vm672 = vcmp.ge.f32.partialorder %v418, 0.0
  %vm673 = vcmp.ge.f32.partialorder %v421, 0.0
  %vm674 = vcmp.ge.f32.partialorder %v426, 0.0
  %vm675 = vcmp.ge.f32.partialorder %v429, 0.0
  %vm676 = vcmp.ge.f32.partialorder %v434, 0.0
  %vm677 = vcmp.ge.f32.partialorder %v437, 0.0
  %vm678 = vcmp.ge.f32.partialorder %v442, 0.0
  %vm679 = vcmp.ge.f32.partialorder %v445, 0.0
  %vm680 = vcmp.ge.f32.partialorder %v450, 0.0
  %vm681 = vcmp.ge.f32.partialorder %v453, 0.0
  %vm682 = vcmp.ge.f32.partialorder %v458, 0.0
  %vm683 = vcmp.ge.f32.partialorder %v461, 0.0
  %vm684 = vcmp.ge.f32.partialorder %v466, 0.0
  %vm685 = vcmp.ge.f32.partialorder %v469, 0.0
  %vm686 = vcmp.ge.f32.partialorder %v474, 0.0
  %vm687 = vcmp.ge.f32.partialorder %v477, 0.0
  %vm688 = vcmp.ge.f32.partialorder %v482, 0.0
  %vm689 = vcmp.ge.f32.partialorder %v485, 0.0
  %vm690 = vcmp.ge.f32.partialorder %v490, 0.0
  %vm691 = vcmp.ge.f32.partialorder %v493, 0.0
  %vm692 = vcmp.ge.f32.partialorder %v498, 0.0
  %vm693 = vcmp.ge.f32.partialorder %v501, 0.0
  %vm694 = vcmp.ge.f32.partialorder %v506, 0.0
  %vm695 = vcmp.ge.f32.partialorder %v509, 0.0
  %vm696 = vcmp.ge.f32.partialorder %v514, 0.0
  %vm697 = vcmp.ge.f32.partialorder %v517, 0.0
  %vm698 = vcmp.ge.f32.partialorder %v522, 0.0
  %vm699 = vcmp.ge.f32.partialorder %v525, 0.0
  %vm700 = vcmp.ge.f32.partialorder %v530, 0.0
  %vm701 = vcmp.ge.f32.partialorder %v533, 0.0
  %vm702 = vcmp.ge.f32.partialorder %v538, 0.0
  %vm703 = vcmp.ge.f32.partialorder %v541, 0.0
  %vm704 = vcmp.ge.f32.partialorder %v546, 0.0
  %vm705 = vcmp.ge.f32.partialorder %v549, 0.0
  %vm706 = vcmp.ge.f32.partialorder %v554, 0.0
  %vm707 = vcmp.ge.f32.partialorder %v557, 0.0
  %vm708 = vcmp.ge.f32.partialorder %v562, 0.0
  %vm709 = vcmp.ge.f32.partialorder %v565, 0.0
  %vm710 = vcmp.ge.f32.partialorder %v570, 0.0
  %vm711 = vcmp.ge.f32.partialorder %v573, 0.0
  %vm712 = vcmp.ge.f32.partialorder %v578, 0.0
  %vm713 = vcmp.ge.f32.partialorder %v581, 0.0
  %vm714 = vcmp.ge.f32.partialorder %v586, 0.0
  %vm715 = vcmp.ge.f32.partialorder %v589, 0.0
  %vm716 = vcmp.ge.f32.partialorder %v594, 0.0
  %vm717 = vcmp.ge.f32.partialorder %v597, 0.0
  %vm718 = vcmp.ge.f32.partialorder %v602, 0.0
  %vm719 = vcmp.ge.f32.partialorder %v605, 0.0
  %vm720 = vcmp.ge.f32.partialorder %v610, 0.0
  %vm721 = vcmp.ge.f32.partialorder %v613, 0.0
  %vm722 = vcmp.ge.f32.partialorder %v618, 0.0
  %vm723 = vcmp.ge.f32.partialorder %v621, 0.0
  %vm724 = vcmp.ge.f32.partialorder %v626, 0.0
  %vm725 = vcmp.ge.f32.partialorder %v629, 0.0
  %vm726 = vcmp.ge.f32.partialorder %v634, 0.0
  %vm727 = vcmp.ge.f32.partialorder %v637, 0.0
  %vm728 = vcmp.ge.f32.partialorder %v642, 0.0
  %vm729 = vcmp.ge.f32.partialorder %v645, 0.0
  %vm730 = vcmp.ge.f32.partialorder %v650, 0.0
  %vm731 = vcmp.ge.f32.partialorder %v653, 0.0
  %vm732 = vcmp.ge.f32.partialorder %v658, 0.0
  %vm733 = vcmp.ge.f32.partialorder %v661, 0.0
  %vm734 = vcmp.ge.f32.partialorder %v666, 0.0
  %vm735 = vcmp.ge.f32.partialorder %v669, 0.0
  %v736 = vmul.f32 %v418, 0.2
  %v737 = vmul.f32 %v421, 0.2
  %v738 = vmul.f32 %v426, 0.2
  %v739 = vmul.f32 %v429, 0.2
  %v740 = vmul.f32 %v434, 0.2
  %v741 = vmul.f32 %v437, 0.2
  %v742 = vmul.f32 %v442, 0.2
  %v743 = vmul.f32 %v445, 0.2
  %v744 = vmul.f32 %v450, 0.2
  %v745 = vmul.f32 %v453, 0.2
  %v746 = vmul.f32 %v458, 0.2
  %v747 = vmul.f32 %v461, 0.2
  %v748 = vmul.f32 %v466, 0.2
  %v749 = vmul.f32 %v469, 0.2
  %v750 = vmul.f32 %v474, 0.2
  %v751 = vmul.f32 %v477, 0.2
  %v752 = vmul.f32 %v482, 0.2
  %v753 = vmul.f32 %v485, 0.2
  %v754 = vmul.f32 %v490, 0.2
  %v755 = vmul.f32 %v493, 0.2
  %v756 = vmul.f32 %v498, 0.2
  %v757 = vmul.f32 %v501, 0.2
  %v758 = vmul.f32 %v506, 0.2
  %v759 = vmul.f32 %v509, 0.2
  %v760 = vmul.f32 %v514, 0.2
  %v761 = vmul.f32 %v517, 0.2
  %v762 = vmul.f32 %v522, 0.2
  %v763 = vmul.f32 %v525, 0.2
  %v764 = vmul.f32 %v530, 0.2
  %v765 = vmul.f32 %v533, 0.2
  %v766 = vmul.f32 %v538, 0.2
  %v767 = vmul.f32 %v541, 0.2
  %v768 = vmul.f32 %v546, 0.2
  %v769 = vmul.f32 %v549, 0.2
  %v770 = vmul.f32 %v554, 0.2
  %v771 = vmul.f32 %v557, 0.2
  %v772 = vmul.f32 %v562, 0.2
  %v773 = vmul.f32 %v565, 0.2
  %v774 = vmul.f32 %v570, 0.2
  %v775 = vmul.f32 %v573, 0.2
  %v776 = vmul.f32 %v578, 0.2
  %v777 = vmul.f32 %v581, 0.2
  %v778 = vmul.f32 %v586, 0.2
  %v779 = vmul.f32 %v589, 0.2
  %v780 = vmul.f32 %v594, 0.2
  %v781 = vmul.f32 %v597, 0.2
  %v782 = vmul.f32 %v602, 0.2
  %v783 = vmul.f32 %v605, 0.2
  %v784 = vmul.f32 %v610, 0.2
  %v785 = vmul.f32 %v613, 0.2
  %v786 = vmul.f32 %v618, 0.2
  %v787 = vmul.f32 %v621, 0.2
  %v788 = vmul.f32 %v626, 0.2
  %v789 = vmul.f32 %v629, 0.2
  %v790 = vmul.f32 %v634, 0.2
  %v791 = vmul.f32 %v637, 0.2
  %v792 = vmul.f32 %v642, 0.2
  %v793 = vmul.f32 %v645, 0.2
  %v794 = vmul.f32 %v650, 0.2
  %v795 = vmul.f32 %v653, 0.2
  %v796 = vmul.f32 %v658, 0.2
  %v797 = vmul.f32 %v661, 0.2
  %v798 = vmul.f32 %v666, 0.2
  %v799 = vmul.f32 %v669, 0.2
  %v800 = vsel %vm672, %v418, %v736
  %v801 = vsel %vm673, %v421, %v737
  %v802 = vsel %vm674, %v426, %v738
  %v803 = vsel %vm675, %v429, %v739
  %v804 = vsel %vm676, %v434, %v740
  %v805 = vsel %vm677, %v437, %v741
  %v806 = vsel %vm678, %v442, %v742
  %v807 = vsel %vm679, %v445, %v743
  %v808 = vsel %vm680, %v450, %v744
  %v809 = vsel %vm681, %v453, %v745
  %v810 = vsel %vm682, %v458, %v746
  %v811 = vsel %vm683, %v461, %v747
  %v812 = vsel %vm684, %v466, %v748
  %v813 = vsel %vm685, %v469, %v749
  %v814 = vsel %vm686, %v474, %v750
  %v815 = vsel %vm687, %v477, %v751
  %v816 = vsel %vm688, %v482, %v752
  %v817 = vsel %vm689, %v485, %v753
  %v818 = vsel %vm690, %v490, %v754
  %v819 = vsel %vm691, %v493, %v755
  %v820 = vsel %vm692, %v498, %v756
  %v821 = vsel %vm693, %v501, %v757
  %v822 = vsel %vm694, %v506, %v758
  %v823 = vsel %vm695, %v509, %v759
  %v824 = vsel %vm696, %v514, %v760
  %v825 = vsel %vm697, %v517, %v761
  %v826 = vsel %vm698, %v522, %v762
  %v827 = vsel %vm699, %v525, %v763
  %v828 = vsel %vm700, %v530, %v764
  %v829 = vsel %vm701, %v533, %v765
  %v830 = vsel %vm702, %v538, %v766
  %v831 = vsel %vm703, %v541, %v767
  %v832 = vsel %vm704, %v546, %v768
  %v833 = vsel %vm705, %v549, %v769
  %v834 = vsel %vm706, %v554, %v770
  %v835 = vsel %vm707, %v557, %v771
  %v836 = vsel %vm708, %v562, %v772
  %v837 = vsel %vm709, %v565, %v773
  %v838 = vsel %vm710, %v570, %v774
  %v839 = vsel %vm711, %v573, %v775
  %v840 = vsel %vm712, %v578, %v776
  %v841 = vsel %vm713, %v581, %v777
  %v842 = vsel %vm714, %v586, %v778
  %v843 = vsel %vm715, %v589, %v779
  %v844 = vsel %vm716, %v594, %v780
  %v845 = vsel %vm717, %v597, %v781
  %v846 = vsel %vm718, %v602, %v782
  %v847 = vsel %vm719, %v605, %v783
  %v848 = vsel %vm720, %v610, %v784
  %v849 = vsel %vm721, %v613, %v785
  %v850 = vsel %vm722, %v618, %v786
  %v851 = vsel %vm723, %v621, %v787
  %v852 = vsel %vm724, %v626, %v788
  %v853 = vsel %vm725, %v629, %v789
  %v854 = vsel %vm726, %v634, %v790
  %v855 = vsel %vm727, %v637, %v791
  %v856 = vsel %vm728, %v642, %v792
  %v857 = vsel %vm729, %v645, %v793
  %v858 = vsel %vm730, %v650, %v794
  %v859 = vsel %vm731, %v653, %v795
  %v860 = vsel %vm732, %v658, %v796
  %v861 = vsel %vm733, %v661, %v797
  %v862 = vsel %vm734, %v666, %v798
  %v863 = vsel %vm735, %v669, %v799
  %vm864 = vcmask 130048
  %865 = vst.msk [vmem:[%s3] sm:$0xff] %vm864, %v800
  %866 = vst.msk [vmem:[%s3 + $0x8] sm:$0xff] %vm864, %v801
  %867 = vst.msk [vmem:[%s3 + $0x10] sm:$0xff] %vm864, %v802
  %868 = vst.msk [vmem:[%s3 + $0x18] sm:$0xff] %vm864, %v803
  %869 = vst.msk [vmem:[%s3 + $0x20] sm:$0xff] %vm864, %v804
  %870 = vst.msk [vmem:[%s3 + $0x28] sm:$0xff] %vm864, %v805
  %871 = vst.msk [vmem:[%s3 + $0x30] sm:$0xff] %vm864, %v806
  %872 = vst.msk [vmem:[%s3 + $0x38] sm:$0xff] %vm864, %v807
  %873 = vst.msk [vmem:[%s3 + $0x40] sm:$0xff] %vm864, %v808
  %874 = vst.msk [vmem:[%s3 + $0x48] sm:$0xff] %vm864, %v809
  %875 = vst.msk [vmem:[%s3 + $0x50] sm:$0xff] %vm864, %v810
  %876 = vst.msk [vmem:[%s3 + $0x58] sm:$0xff] %vm864, %v811
  %877 = vst.msk [vmem:[%s3 + $0x60] sm:$0xff] %vm864, %v812
  %878 = vst.msk [vmem:[%s3 + $0x68] sm:$0xff] %vm864, %v813
  %879 = vst.msk [vmem:[%s3 + $0x70] sm:$0xff] %vm864, %v814
  %880 = vst.msk [vmem:[%s3 + $0x78] sm:$0xff] %vm864, %v815
  %881 = vst.msk [vmem:[%s3 + $0x80] sm:$0xff] %vm864, %v816
  %882 = vst.msk [vmem:[%s3 + $0x88] sm:$0xff] %vm864, %v817
  %883 = vst.msk [vmem:[%s3 + $0x90] sm:$0xff] %vm864, %v818
  %884 = vst.msk [vmem:[%s3 + $0x98] sm:$0xff] %vm864, %v819
  %885 = vst.msk [vmem:[%s3 + $0xa0] sm:$0xff] %vm864, %v820
  %886 = vst.msk [vmem:[%s3 + $0xa8] sm:$0xff] %vm864, %v821
  %887 = vst.msk [vmem:[%s3 + $0xb0] sm:$0xff] %vm864, %v822
  %888 = vst.msk [vmem:[%s3 + $0xb8] sm:$0xff] %vm864, %v823
  %889 = vst.msk [vmem:[%s3 + $0xc0] sm:$0xff] %vm864, %v824
  %890 = vst.msk [vmem:[%s3 + $0xc8] sm:$0xff] %vm864, %v825
  %891 = vst.msk [vmem:[%s3 + $0xd0] sm:$0xff] %vm864, %v826
  %892 = vst.msk [vmem:[%s3 + $0xd8] sm:$0xff] %vm864, %v827
  %893 = vst.msk [vmem:[%s3 + $0xe0] sm:$0xff] %vm864, %v828
  %894 = vst.msk [vmem:[%s3 + $0xe8] sm:$0xff] %vm864, %v829
  %895 = vst.msk [vmem:[%s3 + $0xf0] sm:$0xff] %vm864, %v830
  %896 = vst.msk [vmem:[%s3 + $0xf8] sm:$0xff] %vm864, %v831
  %897 = vst.msk [vmem:[%s3 + $0x100] sm:$0xff] %vm864, %v832
  %898 = vst.msk [vmem:[%s3 + $0x108] sm:$0xff] %vm864, %v833
  %899 = vst.msk [vmem:[%s3 + $0x110] sm:$0xff] %vm864, %v834
  %900 = vst.msk [vmem:[%s3 + $0x118] sm:$0xff] %vm864, %v835
  %901 = vst.msk [vmem:[%s3 + $0x120] sm:$0xff] %vm864, %v836
  %902 = vst.msk [vmem:[%s3 + $0x128] sm:$0xff] %vm864, %v837
  %903 = vst.msk [vmem:[%s3 + $0x130] sm:$0xff] %vm864, %v838
  %904 = vst.msk [vmem:[%s3 + $0x138] sm:$0xff] %vm864, %v839
  %905 = vst.msk [vmem:[%s3 + $0x140] sm:$0xff] %vm864, %v840
  %906 = vst.msk [vmem:[%s3 + $0x148] sm:$0xff] %vm864, %v841
  %907 = vst.msk [vmem:[%s3 + $0x150] sm:$0xff] %vm864, %v842
  %908 = vst.msk [vmem:[%s3 + $0x158] sm:$0xff] %vm864, %v843
  %909 = vst.msk [vmem:[%s3 + $0x160] sm:$0xff] %vm864, %v844
  %910 = vst.msk [vmem:[%s3 + $0x168] sm:$0xff] %vm864, %v845
  %911 = vst.msk [vmem:[%s3 + $0x170] sm:$0xff] %vm864, %v846
  %912 = vst.msk [vmem:[%s3 + $0x178] sm:$0xff] %vm864, %v847
  %913 = vst.msk [vmem:[%s3 + $0x180] sm:$0xff] %vm864, %v848
  %914 = vst.msk [vmem:[%s3 + $0x188] sm:$0xff] %vm864, %v849
  %915 = vst.msk [vmem:[%s3 + $0x190] sm:$0xff] %vm864, %v850
  %916 = vst.msk [vmem:[%s3 + $0x198] sm:$0xff] %vm864, %v851
  %917 = vst.msk [vmem:[%s3 + $0x1a0] sm:$0xff] %vm864, %v852
  %918 = vst.msk [vmem:[%s3 + $0x1a8] sm:$0xff] %vm864, %v853
  %919 = vst.msk [vmem:[%s3 + $0x1b0] sm:$0xff] %vm864, %v854
  %920 = vst.msk [vmem:[%s3 + $0x1b8] sm:$0xff] %vm864, %v855
  %921 = vst.msk [vmem:[%s3 + $0x1c0] sm:$0xff] %vm864, %v856
  %922 = vst.msk [vmem:[%s3 + $0x1c8] sm:$0xff] %vm864, %v857
  %923 = vst.msk [vmem:[%s3 + $0x1d0] sm:$0xff] %vm864, %v858
  %924 = vst.msk [vmem:[%s3 + $0x1d8] sm:$0xff] %vm864, %v859
  %925 = vst.msk [vmem:[%s3 + $0x1e0] sm:$0xff] %vm864, %v860
  %926 = vst.msk [vmem:[%s3 + $0x1e8] sm:$0xff] %vm864, %v861
  %927 = vst.msk [vmem:[%s3 + $0x1f0] sm:$0xff] %vm864, %v862
  %928 = vst.msk [vmem:[%s3 + $0x1f8] sm:$0xff] %vm864, %v863
  // Predicated region
  $region14: #{tpu_custom_call.1} parent=0 // pred_check
    _
  $region15: #{tpu_custom_call.1} parent=0 // pred_check_branch
    %930 = sbr.rel (0) target = $region17
  $region16: #{tpu_custom_call.1} parent=0 // pred_region
    _
  $region17: #{tpu_custom_call.1} parent=0 // pred_fallthru
    _
  // Predicated region
  $region18: #{tpu_custom_call.1} parent=0 // pred_check
    _
  $region19: #{tpu_custom_call.1} parent=0 // pred_check_branch
    %932 = sbr.rel (0) target = $region21
  $region20: #{tpu_custom_call.1} parent=0 // pred_region
    _
  $region21: #{tpu_custom_call.1} parent=0 // pred_fallthru
    _

</llo_original>
